<compile_context>
chip_gen: v6e
topology: v6e:2x2x1
jax: 0.10.0
libtpu: 0.0.40
codegen_flags: <defaults>
</compile_context>

<pallas_src>
import functools

import jax
import jax.numpy as jnp
from jax.experimental import pallas as pl
from jax.experimental.pallas import tpu as pltpu

LN_EPS = 1e-5  # PyTorch nn.LayerNorm default eps


def _gelu_exact(x):
    # PyTorch nn.GELU() default = exact (erf-based) GELU.
    return 0.5 * x * (1.0 + jax.lax.erf(x * jnp.float32(0.7071067811865476)))


def _layernorm(x, gamma, beta):
    mean = jnp.mean(x, axis=-1, keepdims=True)
    xc = x - mean                                    # centered once, reused
    var = jnp.mean(xc * xc, axis=-1, keepdims=True)
    return xc * jax.lax.rsqrt(var + LN_EPS) * gamma + beta


def _adapter_kernel(x_ref, w1_ref, w2_ref, p1_ref, p2_ref, out_ref, *,
                    adaptation_rate, compute_dtype):
    x = x_ref[...]                                   # [TM, H] f32
    b1, g1, be1 = p1_ref[0:1, :], p1_ref[1:2, :], p1_ref[2:3, :]
    b2, g2, be2 = p2_ref[0:1, :], p2_ref[1:2, :], p2_ref[2:3, :]

    # Linear(H, H//4): MXU matmul, f32 accumulation.
    h = jnp.dot(x.astype(compute_dtype), w1_ref[...],
                preferred_element_type=jnp.float32) + b1
    h = _gelu_exact(_layernorm(h, g1, be1))

    # Linear(H//4, H): MXU matmul, f32 accumulation.
    a = jnp.dot(h.astype(compute_dtype), w2_ref[...],
                preferred_element_type=jnp.float32) + b2
    a = _layernorm(a, g2, be2)

    # Dropout is the identity (module runs the adapter in eval mode).
    out_ref[...] = (x + jnp.float32(adaptation_rate) * a).astype(out_ref.dtype)


# --------------------------- tiling / VMEM policy ----------------------------

def _round_up(n, m):
    return ((n + m - 1) // m) * m


def _vmem_budget_bytes():
    cap = 64 * 1024 * 1024                      # conservative fallback (v7x)
    try:
        cap = int(getattr(pltpu.get_tpu_info(), "vmem_capacity_bytes", cap))
    except Exception:
        pass
    # Never claim the full physical VMEM; leave headroom for Mosaic scratch.
    return max(32 * 1024 * 1024, int(0.75 * cap))


def _per_row_vmem_bytes(H, H4, compute_itemsize):
    pipeline = 4 * H * 4                        # x-in + out, 2 buffers each, f32
    x_cast = H * compute_itemsize               # matmul-operand copy of x
    h_side = (16 + compute_itemsize) * H4       # h f32 + LN/GELU temps + cast
    a_side = 16 * H                             # a f32 + LN temps + residual
    return pipeline + x_cast + h_side + a_side


def _choose_row_tile(M, per_row_bytes, vmem_budget, resident_bytes):
    avail = vmem_budget - resident_bytes - (2 << 20)
    fit = max(8, avail // max(per_row_bytes, 1))
    # Keep >= 2 grid steps so the "parallel" axis can shard across v7x's two
    # TensorCores; costs nothing on single-TC v5e / v6e.
    half = _round_up(max(8, -(-M // 2)), 8)
    cap = int(min(1024, fit, half))
    if cap >= 256:
        align = 256                             # v6e/v7x MXU row alignment
    elif cap >= 128:
        align = 128                             # v5e MXU row alignment
    else:
        align = 8                               # sublane minimum
    return max(8, (cap // align) * align)


# ------------------------------- entry point ---------------------------------

def continual_adapter_forward(x, adapter_params, adaptation_rate=0.1,
                              mxu_dtype=jnp.bfloat16):
    """x: [B, S, H] float32 -> adapted_x [B, S, H] float32.

    mxu_dtype controls the matmul operand precision: jnp.bfloat16 (default) is
    MXU-native and halves the resident weight VMEM (documented deviation from
    the PyTorch f32 Linear layers); jnp.float32 keeps exact f32 semantics.
    """
    B, S, H = x.shape
    H4 = H // 4
    M = B * S
    x2 = x.reshape(M, H)

    w1, b1, g1, be1, w2, b2, g2, be2 = adapter_params
    w1c = w1.astype(mxu_dtype)
    w2c = w2.astype(mxu_dtype)
    # Pack the six [1,F] bias / LayerNorm vectors into two slabs.
    p1 = jnp.concatenate([b1, g1, be1], axis=0).astype(jnp.float32)   # [3, H4]
    p2 = jnp.concatenate([b2, g2, be2], axis=0).astype(jnp.float32)   # [3, H]
    kparams = (w1c, w2c, p1, p2)
    param_bytes = sum(int(p.size) * p.dtype.itemsize for p in kparams)

    vmem_budget = _vmem_budget_bytes()
    if param_bytes > int(0.6 * vmem_budget):
        # TODO(synk): add a K-tiled weight path (reduction grid axis marked
        # "arbitrary" + f32 VMEM accumulator) for very large hidden sizes
        # (H >= ~8192 on v7x) where the weights cannot stay VMEM-resident.
        raise NotImplementedError(
            "adapter weights do not fit resident in VMEM; weight K-tiling "
            "path not implemented")

    cdt_size = jnp.dtype(mxu_dtype).itemsize
    per_row = _per_row_vmem_bytes(H, H4, cdt_size)
    tm = _choose_row_tile(M, per_row, vmem_budget, param_bytes)

    M_pad = _round_up(M, tm)
    if M_pad != M:
        x2 = jnp.pad(x2, ((0, M_pad - M), (0, 0)))
    grid = (M_pad // tm,)

    row_spec = pl.BlockSpec((tm, H), lambda i: (i, 0))

    def param_specs(single_buffered):
        specs = []
        for p in kparams:
            if single_buffered:
                # Constant index map + single buffer: one resident copy only.
                specs.append(pl.BlockSpec(p.shape, lambda i: (0, 0),
                                          pipeline_mode=pl.Buffered(1)))
            else:
                specs.append(pl.BlockSpec(p.shape, lambda i: (0, 0)))
        return specs

    flops = 2 * M * (H * H4 + H4 * H) + 12 * M * (H + H4)
    cost = pl.CostEstimate(
        flops=int(flops),
        transcendentals=int(2 * M),   # two rsqrt/row; exact-erf GELU is a VALU poly
        bytes_accessed=int(2 * M * H * 4 + param_bytes))

    kernel = functools.partial(_adapter_kernel,
                               adaptation_rate=adaptation_rate,
                               compute_dtype=mxu_dtype)

    def build(single_buffered):
        return pl.pallas_call(
            kernel,
            grid=grid,
            in_specs=[row_spec] + param_specs(single_buffered),
            out_specs=row_spec,
            out_shape=jax.ShapeDtypeStruct((M_pad, H), x.dtype),
            compiler_params=pltpu.CompilerParams(
                dimension_semantics=("parallel",),
                vmem_limit_bytes=int(vmem_budget)),
            cost_estimate=cost,
        )

    try:
        out = build(True)(x2, *kparams)
    except Exception:
        # pipeline_mode=pl.Buffered(1) not accepted by this jax version:
        # fall back to default (double-buffered) parameter specs.
        out = build(False)(x2, *kparams)

    return out[:M].reshape(B, S, H)


# ----- forward side effects (plain JAX; cheap global reductions) -------------

def update_running_stats(x, running_mean, running_var, momentum=0.1):
    flat = x.reshape(-1, x.shape[-1])
    batch_mean = jnp.mean(flat, axis=0)
    batch_var = jnp.var(flat, axis=0)           # unbiased=False in PyTorch
    new_mean = (1.0 - momentum) * running_mean + momentum * batch_mean
    new_var = (1.0 - momentum) * running_var + momentum * batch_var
    return new_mean, new_var


def compute_importance(x, running_mean, running_var):
    flat = x.reshape(-1, x.shape[-1])
    normalized = (flat - running_mean) / (jnp.sqrt(running_var) + 1e-5)
    return jnp.mean(jnp.abs(normalized))


def drift_score(x, drift_params):
    wd1, bd1, wd2, bd2 = drift_params
    pooled = x.mean(axis=1)                     # [B, H]
    h = _gelu_exact(pooled @ wd1 + bd1)
    return jnp.mean(jax.nn.sigmoid(h @ wd2 + bd2))

# TODO(synk): ReplayBuffer add/sample, the importance/drift-threshold Python
# branching, and the drift-triggered Adam fine-tuning loop (_perform_adaptation)
# are host-side stateful control flow with no Pallas equivalent.


# ----- deterministic synthetic init matching the module's parameter shapes ---

def init_params(key, hidden_size):
    H = hidden_size
    H4, H2 = H // 4, H // 2
    ks = jax.random.split(key, 4)

    def linear(k, fan_in, fan_out):
        bound = 1.0 / float(fan_in) ** 0.5
        kw, kb = jax.random.split(k)
        w = jax.random.uniform(kw, (fan_in, fan_out), jnp.float32, -bound, bound)
        b = jax.random.uniform(kb, (1, fan_out), jnp.float32, -bound, bound)
        return w, b

    w1, b1 = linear(ks[0], H, H4)      # adapter[0]
    w2, b2 = linear(ks[1], H4, H)      # adapter[3]
    g1 = jnp.ones((1, H4), jnp.float32)    # adapter LayerNorm(H//4)
    be1 = jnp.zeros((1, H4), jnp.float32)
    g2 = jnp.ones((1, H), jnp.float32)     # adapter LayerNorm(H)
    be2 = jnp.zeros((1, H), jnp.float32)
    adapter_params = (w1, b1, g1, be1, w2, b2, g2, be2)

    wd1, bd1 = linear(ks[2], H, H2)    # drift_detector[0]
    wd2, bd2 = linear(ks[3], H2, 1)    # drift_detector[2]
    drift_params = (wd1, bd1, wd2, bd2)
    return adapter_params, drift_params


# ----- pure-JAX reference (operand precision selectable) ----------------------

def reference_forward(x, adapter_params, adaptation_rate=0.1,
                      mxu_dtype=jnp.float32):
    w1, b1, g1, be1, w2, b2, g2, be2 = adapter_params
    h = jnp.dot(x.astype(mxu_dtype), w1.astype(mxu_dtype),
                preferred_element_type=jnp.float32) + b1
    h = _gelu_exact(_layernorm(h, g1, be1))
    a = jnp.dot(h.astype(mxu_dtype), w2.astype(mxu_dtype),
                preferred_element_type=jnp.float32) + b2
    a = _layernorm(a, g2, be2)
    return x + adaptation_rate * a


if __name__ == "__main__":
    B, S, H = 2, 8, 32
    key = jax.random.PRNGKey(0)
    k_x, k_p = jax.random.split(key)
    x = jax.random.normal(k_x, (B, S, H), jnp.float32)
    adapter_params, drift_params = init_params(k_p, H)
    running_mean = jnp.zeros((H,), jnp.float32)
    running_var = jnp.ones((H,), jnp.float32)

    # Default (bf16 MXU operands, f32 accumulation) and exact-f32 paths.
    out_bf16 = continual_adapter_forward(x, adapter_params, adaptation_rate=0.1)
    out_f32 = continual_adapter_forward(x, adapter_params, adaptation_rate=0.1,
                                        mxu_dtype=jnp.float32)
    jax.block_until_ready((out_bf16, out_f32))

    # Forward side effects of the module (functional versions).
    new_mean, new_var = update_running_stats(x, running_mean, running_var)
    importance = compute_importance(x, new_mean, new_var)
    dscore = drift_score(x, drift_params)
    jax.block_until_ready((new_mean, new_var, importance, dscore))

    ref_f32 = reference_forward(x, adapter_params, 0.1, mxu_dtype=jnp.float32)
    ref_bf16 = reference_forward(x, adapter_params, 0.1, mxu_dtype=jnp.bfloat16)

    assert out_f32.shape == (B, S, H) and out_bf16.shape == (B, S, H)
    assert jnp.allclose(out_f32, ref_f32, atol=5e-3, rtol=5e-3), "f32 path mismatch"
    assert jnp.allclose(out_bf16, ref_bf16, atol=2e-3, rtol=2e-3), "bf16 path mismatch"
    assert jnp.allclose(out_bf16, ref_f32, atol=3e-2, rtol=3e-2), "bf16 vs f32 drift"

    print("KERNEL_OK")
</pallas_src>

<mosaic_0001>
module attributes {stable_mosaic.version = 11 : i64} {
  func.func @_adapter_kernel(%arg0: i32, %arg1: memref<8x32xf32, #tpu.memory_space<vmem>>, %arg2: memref<32x8xbf16, #tpu.memory_space<vmem>>, %arg3: memref<8x32xbf16, #tpu.memory_space<vmem>>, %arg4: memref<3x8xf32, #tpu.memory_space<vmem>>, %arg5: memref<3x32xf32, #tpu.memory_space<vmem>>, %arg6: memref<8x32xf32, #tpu.memory_space<vmem>>) attributes {dimension_semantics = [#tpu.dimension_semantics<parallel>], iteration_bounds = array<i64: 2>, scalar_prefetch = 0 : i64, scratch_operands = 0 : i64, tpu.core_type = #tpu.core_type<tc>, window_params = [{transform_indices = @transform_0, window_bounds = array<i64: 8, 32>}, {pipeline_mode = #tpu.pipeline_mode<synchronous>, transform_indices = @transform_1, window_bounds = array<i64: 32, 8>}, {pipeline_mode = #tpu.pipeline_mode<synchronous>, transform_indices = @transform_2, window_bounds = array<i64: 8, 32>}, {pipeline_mode = #tpu.pipeline_mode<synchronous>, transform_indices = @transform_3, window_bounds = array<i64: 3, 8>}, {pipeline_mode = #tpu.pipeline_mode<synchronous>, transform_indices = @transform_4, window_bounds = array<i64: 3, 32>}, {transform_indices = @transform_5, window_bounds = array<i64: 8, 32>}]} {
    %c0 = arith.constant 0 : index
    %c0_0 = arith.constant 0 : index
    %0 = vector.load %arg1[%c0, %c0_0] : memref<8x32xf32, #tpu.memory_space<vmem>>, vector<8x32xf32>
    %c0_1 = arith.constant 0 : index
    %c0_2 = arith.constant 0 : index
    %1 = vector.load %arg4[%c0_1, %c0_2] : memref<3x8xf32, #tpu.memory_space<vmem>>, vector<1x8xf32>
    %c1 = arith.constant 1 : index
    %c0_3 = arith.constant 0 : index
    %2 = vector.load %arg4[%c1, %c0_3] : memref<3x8xf32, #tpu.memory_space<vmem>>, vector<1x8xf32>
    %c2 = arith.constant 2 : index
    %c0_4 = arith.constant 0 : index
    %3 = vector.load %arg4[%c2, %c0_4] : memref<3x8xf32, #tpu.memory_space<vmem>>, vector<1x8xf32>
    %c0_5 = arith.constant 0 : index
    %c0_6 = arith.constant 0 : index
    %4 = vector.load %arg5[%c0_5, %c0_6] : memref<3x32xf32, #tpu.memory_space<vmem>>, vector<1x32xf32>
    %c1_7 = arith.constant 1 : index
    %c0_8 = arith.constant 0 : index
    %5 = vector.load %arg5[%c1_7, %c0_8] : memref<3x32xf32, #tpu.memory_space<vmem>>, vector<1x32xf32>
    %c2_9 = arith.constant 2 : index
    %c0_10 = arith.constant 0 : index
    %6 = vector.load %arg5[%c2_9, %c0_10] : memref<3x32xf32, #tpu.memory_space<vmem>>, vector<1x32xf32>
    %7 = arith.truncf %0 : vector<8x32xf32> to vector<8x32xbf16>
    %c0_11 = arith.constant 0 : index
    %c0_12 = arith.constant 0 : index
    %8 = vector.load %arg2[%c0_11, %c0_12] : memref<32x8xbf16, #tpu.memory_space<vmem>>, vector<32x8xbf16>
    %cst = arith.constant dense<0.000000e+00> : vector<8x8xf32>
    %9 = tpu.matmul %7, %8, %cst {dimension_numbers = #tpu.dot_dimension_numbers<[1], [0], [0], [1], [0, 0, 1, 1], [], []>} : vector<8x32xbf16>, vector<32x8xbf16>, vector<8x8xf32> -> vector<8x8xf32>
    %10 = vector.broadcast %1 : vector<1x8xf32> to vector<8x8xf32>
    %11 = arith.addf %9, %10 : vector<8x8xf32>
    %cst_13 = arith.constant dense<0.000000e+00> : vector<8xf32>
    %12 = vector.multi_reduction <add>, %11, %cst_13 [1] : vector<8x8xf32> to vector<8xf32>
    %13 = vector.shape_cast %12 : vector<8xf32> to vector<8x1xf32>
    %cst_14 = arith.constant 8.000000e+00 : f32
    %14 = vector.broadcast %cst_14 : f32 to vector<8x1xf32>
    %15 = arith.divf %13, %14 : vector<8x1xf32>
    %16 = vector.broadcast %15 : vector<8x1xf32> to vector<8x8xf32>
    %17 = arith.subf %11, %16 : vector<8x8xf32>
    %18 = arith.mulf %17, %17 : vector<8x8xf32>
    %cst_15 = arith.constant dense<0.000000e+00> : vector<8xf32>
    %19 = vector.multi_reduction <add>, %18, %cst_15 [1] : vector<8x8xf32> to vector<8xf32>
    %20 = vector.shape_cast %19 : vector<8xf32> to vector<8x1xf32>
    %cst_16 = arith.constant 8.000000e+00 : f32
    %21 = vector.broadcast %cst_16 : f32 to vector<8x1xf32>
    %22 = arith.divf %20, %21 : vector<8x1xf32>
    %cst_17 = arith.constant 9.99999974E-6 : f32
    %23 = vector.broadcast %cst_17 : f32 to vector<8x1xf32>
    %24 = arith.addf %22, %23 : vector<8x1xf32>
    %25 = math.rsqrt %24 : vector<8x1xf32>
    %26 = vector.broadcast %25 : vector<8x1xf32> to vector<8x8xf32>
    %27 = arith.mulf %17, %26 : vector<8x8xf32>
    %28 = vector.broadcast %2 : vector<1x8xf32> to vector<8x8xf32>
    %29 = arith.mulf %27, %28 : vector<8x8xf32>
    %30 = vector.broadcast %3 : vector<1x8xf32> to vector<8x8xf32>
    %31 = arith.addf %29, %30 : vector<8x8xf32>
    %cst_18 = arith.constant 5.000000e-01 : f32
    %32 = vector.broadcast %cst_18 : f32 to vector<8x8xf32>
    %33 = arith.mulf %32, %31 : vector<8x8xf32>
    %cst_19 = arith.constant 0.707106769 : f32
    %34 = vector.broadcast %cst_19 : f32 to vector<8x8xf32>
    %35 = arith.mulf %31, %34 : vector<8x8xf32>
    %36 = math.erf %35 : vector<8x8xf32>
    %cst_20 = arith.constant 1.000000e+00 : f32
    %37 = vector.broadcast %cst_20 : f32 to vector<8x8xf32>
    %38 = arith.addf %37, %36 : vector<8x8xf32>
    %39 = arith.mulf %33, %38 : vector<8x8xf32>
    %40 = arith.truncf %39 : vector<8x8xf32> to vector<8x8xbf16>
    %c0_21 = arith.constant 0 : index
    %c0_22 = arith.constant 0 : index
    %41 = vector.load %arg3[%c0_21, %c0_22] : memref<8x32xbf16, #tpu.memory_space<vmem>>, vector<8x32xbf16>
    %cst_23 = arith.constant dense<0.000000e+00> : vector<8x32xf32>
    %42 = tpu.matmul %40, %41, %cst_23 {dimension_numbers = #tpu.dot_dimension_numbers<[1], [0], [0], [1], [0, 0, 1, 1], [], []>} : vector<8x8xbf16>, vector<8x32xbf16>, vector<8x32xf32> -> vector<8x32xf32>
    %43 = vector.broadcast %4 : vector<1x32xf32> to vector<8x32xf32>
    %44 = arith.addf %42, %43 : vector<8x32xf32>
    %cst_24 = arith.constant dense<0.000000e+00> : vector<8xf32>
    %45 = vector.multi_reduction <add>, %44, %cst_24 [1] : vector<8x32xf32> to vector<8xf32>
    %46 = vector.shape_cast %45 : vector<8xf32> to vector<8x1xf32>
    %cst_25 = arith.constant 3.200000e+01 : f32
    %47 = vector.broadcast %cst_25 : f32 to vector<8x1xf32>
    %48 = arith.divf %46, %47 : vector<8x1xf32>
    %49 = vector.broadcast %48 : vector<8x1xf32> to vector<8x32xf32>
    %50 = arith.subf %44, %49 : vector<8x32xf32>
    %51 = arith.mulf %50, %50 : vector<8x32xf32>
    %cst_26 = arith.constant dense<0.000000e+00> : vector<8xf32>
    %52 = vector.multi_reduction <add>, %51, %cst_26 [1] : vector<8x32xf32> to vector<8xf32>
    %53 = vector.shape_cast %52 : vector<8xf32> to vector<8x1xf32>
    %cst_27 = arith.constant 3.200000e+01 : f32
    %54 = vector.broadcast %cst_27 : f32 to vector<8x1xf32>
    %55 = arith.divf %53, %54 : vector<8x1xf32>
    %cst_28 = arith.constant 9.99999974E-6 : f32
    %56 = vector.broadcast %cst_28 : f32 to vector<8x1xf32>
    %57 = arith.addf %55, %56 : vector<8x1xf32>
    %58 = math.rsqrt %57 : vector<8x1xf32>
    %59 = vector.broadcast %58 : vector<8x1xf32> to vector<8x32xf32>
    %60 = arith.mulf %50, %59 : vector<8x32xf32>
    %61 = vector.broadcast %5 : vector<1x32xf32> to vector<8x32xf32>
    %62 = arith.mulf %60, %61 : vector<8x32xf32>
    %63 = vector.broadcast %6 : vector<1x32xf32> to vector<8x32xf32>
    %64 = arith.addf %62, %63 : vector<8x32xf32>
    %cst_29 = arith.constant 1.000000e-01 : f32
    %65 = vector.broadcast %cst_29 : f32 to vector<8x32xf32>
    %66 = arith.mulf %65, %64 : vector<8x32xf32>
    %67 = arith.addf %0, %66 : vector<8x32xf32>
    %c0_30 = arith.constant 0 : index
    %c0_31 = arith.constant 0 : index
    %68 = vector.load %arg6[%c0_30, %c0_31] : memref<8x32xf32, #tpu.memory_space<vmem>>, vector<8x32xf32>
    tpu.vector_store %arg6[%c0_30, %c0_31], %67 {strides = array<i32>} : memref<8x32xf32, #tpu.memory_space<vmem>>, vector<8x32xf32>,
    return
  }
  func.func @transform_0(%arg0: i32) -> (i32, i32) {
    %c0_i32 = arith.constant 0 : i32
    %c0_i32_0 = arith.constant 0 : i32
    return %arg0, %c0_i32 : i32, i32
  }
  func.func @transform_1(%arg0: i32) -> (i32, i32) {
    %c0_i32 = arith.constant 0 : i32
    %c0_i32_0 = arith.constant 0 : i32
    %c0_i32_1 = arith.constant 0 : i32
    return %c0_i32, %c0_i32_0 : i32, i32
  }
  func.func @transform_2(%arg0: i32) -> (i32, i32) {
    %c0_i32 = arith.constant 0 : i32
    %c0_i32_0 = arith.constant 0 : i32
    %c0_i32_1 = arith.constant 0 : i32
    return %c0_i32, %c0_i32_0 : i32, i32
  }
  func.func @transform_3(%arg0: i32) -> (i32, i32) {
    %c0_i32 = arith.constant 0 : i32
    %c0_i32_0 = arith.constant 0 : i32
    %c0_i32_1 = arith.constant 0 : i32
    return %c0_i32, %c0_i32_0 : i32, i32
  }
  func.func @transform_4(%arg0: i32) -> (i32, i32) {
    %c0_i32 = arith.constant 0 : i32
    %c0_i32_0 = arith.constant 0 : i32
    %c0_i32_1 = arith.constant 0 : i32
    return %c0_i32, %c0_i32_0 : i32, i32
  }
  func.func @transform_5(%arg0: i32) -> (i32, i32) {
    %c0_i32 = arith.constant 0 : i32
    %c0_i32_0 = arith.constant 0 : i32
    return %arg0, %c0_i32 : i32, i32
  }
}

module attributes {stable_mosaic.version = 11 : i64} {
  func.func @_adapter_kernel(%arg0: i32, %arg1: memref<8x32xf32, #tpu.memory_space<vmem>>, %arg2: memref<32x8xbf16, #tpu.memory_space<vmem>>, %arg3: memref<8x32xbf16, #tpu.memory_space<vmem>>, %arg4: memref<3x8xf32, #tpu.memory_space<vmem>>, %arg5: memref<3x32xf32, #tpu.memory_space<vmem>>, %arg6: memref<8x32xf32, #tpu.memory_space<vmem>>) attributes {dimension_semantics = [#tpu.dimension_semantics<parallel>], iteration_bounds = array<i64: 2>, scalar_prefetch = 0 : i64, scratch_operands = 0 : i64, tpu.core_type = #tpu.core_type<tc>, window_params = [{transform_indices = @transform_0, window_bounds = array<i64: 8, 32>}, {pipeline_mode = #tpu.pipeline_mode<synchronous>, transform_indices = @transform_1, window_bounds = array<i64: 32, 8>}, {pipeline_mode = #tpu.pipeline_mode<synchronous>, transform_indices = @transform_2, window_bounds = array<i64: 8, 32>}, {pipeline_mode = #tpu.pipeline_mode<synchronous>, transform_indices = @transform_3, window_bounds = array<i64: 3, 8>}, {pipeline_mode = #tpu.pipeline_mode<synchronous>, transform_indices = @transform_4, window_bounds = array<i64: 3, 32>}, {transform_indices = @transform_5, window_bounds = array<i64: 8, 32>}]} {
    %c0 = arith.constant 0 : index
    %c0_0 = arith.constant 0 : index
    %0 = vector.load %arg1[%c0, %c0_0] : memref<8x32xf32, #tpu.memory_space<vmem>>, vector<8x32xf32>
    %c0_1 = arith.constant 0 : index
    %c0_2 = arith.constant 0 : index
    %1 = vector.load %arg4[%c0_1, %c0_2] : memref<3x8xf32, #tpu.memory_space<vmem>>, vector<1x8xf32>
    %c1 = arith.constant 1 : index
    %c0_3 = arith.constant 0 : index
    %2 = vector.load %arg4[%c1, %c0_3] : memref<3x8xf32, #tpu.memory_space<vmem>>, vector<1x8xf32>
    %c2 = arith.constant 2 : index
    %c0_4 = arith.constant 0 : index
    %3 = vector.load %arg4[%c2, %c0_4] : memref<3x8xf32, #tpu.memory_space<vmem>>, vector<1x8xf32>
    %c0_5 = arith.constant 0 : index
    %c0_6 = arith.constant 0 : index
    %4 = vector.load %arg5[%c0_5, %c0_6] : memref<3x32xf32, #tpu.memory_space<vmem>>, vector<1x32xf32>
    %c1_7 = arith.constant 1 : index
    %c0_8 = arith.constant 0 : index
    %5 = vector.load %arg5[%c1_7, %c0_8] : memref<3x32xf32, #tpu.memory_space<vmem>>, vector<1x32xf32>
    %c2_9 = arith.constant 2 : index
    %c0_10 = arith.constant 0 : index
    %6 = vector.load %arg5[%c2_9, %c0_10] : memref<3x32xf32, #tpu.memory_space<vmem>>, vector<1x32xf32>
    %7 = arith.truncf %0 : vector<8x32xf32> to vector<8x32xbf16>
    %c0_11 = arith.constant 0 : index
    %c0_12 = arith.constant 0 : index
    %8 = vector.load %arg2[%c0_11, %c0_12] : memref<32x8xbf16, #tpu.memory_space<vmem>>, vector<32x8xbf16>
    %cst = arith.constant dense<0.000000e+00> : vector<8x8xf32>
    %9 = tpu.matmul %7, %8, %cst {dimension_numbers = #tpu.dot_dimension_numbers<[1], [0], [0], [1], [0, 0, 1, 1], [], []>} : vector<8x32xbf16>, vector<32x8xbf16>, vector<8x8xf32> -> vector<8x8xf32>
    %10 = vector.broadcast %1 : vector<1x8xf32> to vector<8x8xf32>
    %11 = arith.addf %9, %10 : vector<8x8xf32>
    %cst_13 = arith.constant dense<0.000000e+00> : vector<8xf32>
    %12 = vector.multi_reduction <add>, %11, %cst_13 [1] : vector<8x8xf32> to vector<8xf32>
    %13 = vector.shape_cast %12 : vector<8xf32> to vector<8x1xf32>
    %cst_14 = arith.constant 8.000000e+00 : f32
    %14 = vector.broadcast %cst_14 : f32 to vector<8x1xf32>
    %15 = arith.divf %13, %14 : vector<8x1xf32>
    %16 = vector.broadcast %15 : vector<8x1xf32> to vector<8x8xf32>
    %17 = arith.subf %11, %16 : vector<8x8xf32>
    %18 = arith.mulf %17, %17 : vector<8x8xf32>
    %cst_15 = arith.constant dense<0.000000e+00> : vector<8xf32>
    %19 = vector.multi_reduction <add>, %18, %cst_15 [1] : vector<8x8xf32> to vector<8xf32>
    %20 = vector.shape_cast %19 : vector<8xf32> to vector<8x1xf32>
    %cst_16 = arith.constant 8.000000e+00 : f32
    %21 = vector.broadcast %cst_16 : f32 to vector<8x1xf32>
    %22 = arith.divf %20, %21 : vector<8x1xf32>
    %cst_17 = arith.constant 9.99999974E-6 : f32
    %23 = vector.broadcast %cst_17 : f32 to vector<8x1xf32>
    %24 = arith.addf %22, %23 : vector<8x1xf32>
    %25 = math.rsqrt %24 : vector<8x1xf32>
    %26 = vector.broadcast %25 : vector<8x1xf32> to vector<8x8xf32>
    %27 = arith.mulf %17, %26 : vector<8x8xf32>
    %28 = vector.broadcast %2 : vector<1x8xf32> to vector<8x8xf32>
    %29 = arith.mulf %27, %28 : vector<8x8xf32>
    %30 = vector.broadcast %3 : vector<1x8xf32> to vector<8x8xf32>
    %31 = arith.addf %29, %30 : vector<8x8xf32>
    %cst_18 = arith.constant 5.000000e-01 : f32
    %32 = vector.broadcast %cst_18 : f32 to vector<8x8xf32>
    %33 = arith.mulf %32, %31 : vector<8x8xf32>
    %cst_19 = arith.constant 0.707106769 : f32
    %34 = vector.broadcast %cst_19 : f32 to vector<8x8xf32>
    %35 = arith.mulf %31, %34 : vector<8x8xf32>
    %36 = math.erf %35 : vector<8x8xf32>
    %cst_20 = arith.constant 1.000000e+00 : f32
    %37 = vector.broadcast %cst_20 : f32 to vector<8x8xf32>
    %38 = arith.addf %37, %36 : vector<8x8xf32>
    %39 = arith.mulf %33, %38 : vector<8x8xf32>
    %40 = arith.truncf %39 : vector<8x8xf32> to vector<8x8xbf16>
    %c0_21 = arith.constant 0 : index
    %c0_22 = arith.constant 0 : index
    %41 = vector.load %arg3[%c0_21, %c0_22] : memref<8x32xbf16, #tpu.memory_space<vmem>>, vector<8x32xbf16>
    %cst_23 = arith.constant dense<0.000000e+00> : vector<8x32xf32>
    %42 = tpu.matmul %40, %41, %cst_23 {dimension_numbers = #tpu.dot_dimension_numbers<[1], [0], [0], [1], [0, 0, 1, 1], [], []>} : vector<8x8xbf16>, vector<8x32xbf16>, vector<8x32xf32> -> vector<8x32xf32>
    %43 = vector.broadcast %4 : vector<1x32xf32> to vector<8x32xf32>
    %44 = arith.addf %42, %43 : vector<8x32xf32>
    %cst_24 = arith.constant dense<0.000000e+00> : vector<8xf32>
    %45 = vector.multi_reduction <add>, %44, %cst_24 [1] : vector<8x32xf32> to vector<8xf32>
    %46 = vector.shape_cast %45 : vector<8xf32> to vector<8x1xf32>
    %cst_25 = arith.constant 3.200000e+01 : f32
    %47 = vector.broadcast %cst_25 : f32 to vector<8x1xf32>
    %48 = arith.divf %46, %47 : vector<8x1xf32>
    %49 = vector.broadcast %48 : vector<8x1xf32> to vector<8x32xf32>
    %50 = arith.subf %44, %49 : vector<8x32xf32>
    %51 = arith.mulf %50, %50 : vector<8x32xf32>
    %cst_26 = arith.constant dense<0.000000e+00> : vector<8xf32>
    %52 = vector.multi_reduction <add>, %51, %cst_26 [1] : vector<8x32xf32> to vector<8xf32>
    %53 = vector.shape_cast %52 : vector<8xf32> to vector<8x1xf32>
    %cst_27 = arith.constant 3.200000e+01 : f32
    %54 = vector.broadcast %cst_27 : f32 to vector<8x1xf32>
    %55 = arith.divf %53, %54 : vector<8x1xf32>
    %cst_28 = arith.constant 9.99999974E-6 : f32
    %56 = vector.broadcast %cst_28 : f32 to vector<8x1xf32>
    %57 = arith.addf %55, %56 : vector<8x1xf32>
    %58 = math.rsqrt %57 : vector<8x1xf32>
    %59 = vector.broadcast %58 : vector<8x1xf32> to vector<8x32xf32>
    %60 = arith.mulf %50, %59 : vector<8x32xf32>
    %61 = vector.broadcast %5 : vector<1x32xf32> to vector<8x32xf32>
    %62 = arith.mulf %60, %61 : vector<8x32xf32>
    %63 = vector.broadcast %6 : vector<1x32xf32> to vector<8x32xf32>
    %64 = arith.addf %62, %63 : vector<8x32xf32>
    %cst_29 = arith.constant 1.000000e-01 : f32
    %65 = vector.broadcast %cst_29 : f32 to vector<8x32xf32>
    %66 = arith.mulf %65, %64 : vector<8x32xf32>
    %67 = arith.addf %0, %66 : vector<8x32xf32>
    %c0_30 = arith.constant 0 : index
    %c0_31 = arith.constant 0 : index
    %68 = vector.load %arg6[%c0_30, %c0_31] : memref<8x32xf32, #tpu.memory_space<vmem>>, vector<8x32xf32>
    tpu.vector_store %arg6[%c0_30, %c0_31], %67 {strides = array<i32>} : memref<8x32xf32, #tpu.memory_space<vmem>>, vector<8x32xf32>,
    return
  }
  func.func @transform_0(%arg0: i32) -> (i32, i32) {
    %c0_i32 = arith.constant 0 : i32
    %c0_i32_0 = arith.constant 0 : i32
    return %arg0, %c0_i32 : i32, i32
  }
  func.func @transform_1(%arg0: i32) -> (i32, i32) {
    %c0_i32 = arith.constant 0 : i32
    %c0_i32_0 = arith.constant 0 : i32
    %c0_i32_1 = arith.constant 0 : i32
    return %c0_i32, %c0_i32_0 : i32, i32
  }
  func.func @transform_2(%arg0: i32) -> (i32, i32) {
    %c0_i32 = arith.constant 0 : i32
    %c0_i32_0 = arith.constant 0 : i32
    %c0_i32_1 = arith.constant 0 : i32
    return %c0_i32, %c0_i32_0 : i32, i32
  }
  func.func @transform_3(%arg0: i32) -> (i32, i32) {
    %c0_i32 = arith.constant 0 : i32
    %c0_i32_0 = arith.constant 0 : i32
    %c0_i32_1 = arith.constant 0 : i32
    return %c0_i32, %c0_i32_0 : i32, i32
  }
  func.func @transform_4(%arg0: i32) -> (i32, i32) {
    %c0_i32 = arith.constant 0 : i32
    %c0_i32_0 = arith.constant 0 : i32
    %c0_i32_1 = arith.constant 0 : i32
    return %c0_i32, %c0_i32_0 : i32, i32
  }
  func.func @transform_5(%arg0: i32) -> (i32, i32) {
    %c0_i32 = arith.constant 0 : i32
    %c0_i32_0 = arith.constant 0 : i32
    return %arg0, %c0_i32 : i32, i32
  }
}

</mosaic_0001>

<llo_original>
// kernel: tpu_custom_call.1
$region0: #{tpu_custom_call.1}
  #allocation0 [shape = 'u32[]', space=smem, size = 0x4, offset = 0x4, fixed_abs, tag = 'smem constant byte address 0x4 - core index']
  #allocation1 [shape = 'u32[144,128]{1,0:T(1,128)}', space=vmem, size = 0x12000, scoped, tag = 'internal scratch']
  %s0 = inlined_call_operand.vmem [shape: f32[16,32], index: 0, kind: input, shape index: {}]
  %s1 = inlined_call_operand.vmem [shape: bf16[32,8], index: 1, kind: input, shape index: {}]
  %s2 = inlined_call_operand.vmem [shape: bf16[8,32], index: 2, kind: input, shape index: {}]
  %s3 = inlined_call_operand.vmem [shape: f32[3,8], index: 3, kind: input, shape index: {}]
  %s4 = inlined_call_operand.hbm [shape: f32[3,32], index: 4, kind: input, shape index: {}]
  %s5 = inlined_call_operand.hbm [shape: f32[16,32], index: 5, kind: output, shape index: {}]
  %s6 = sld [smem:[#allocation0]]
  $region57: #{tpu_custom_call.1} parent=0
    _
  %s8 = ssub.s32 1, %s6
  %s9 = scalar_select 0, %s8, %s6
  $region1: #{tpu_custom_call.1} parent=0
    #allocation2 [shape = 'u8[2048]{0}', space=vmem, size = 0x800, scoped, tag = 'input window, operand 4, single buffered']
    #allocation3 [shape = 's32[2]{0}', space=sflag, size = 0x8, scoped, tag = 'scoped memory for tpu_custom_call.1']
    #allocation4 [shape = 's32[2]{0}', space=sflag, size = 0x8, scoped, tag = 'scoped memory for tpu_custom_call.1']
    #allocation5 [shape = 'u8[8192]{0}', space=vmem, size = 0x2000, scoped, tag = 'output window, operand 0']
    %10 = vsyncpa [#allocation3], 0
    %11 = vsyncpa [#allocation4], 0
    %s12 = scalar_lea.sflag [#allocation4], 1
    %13 = vsyncpa %s12, 0
    loop: start=0, step=1, limit=4
    $region2: #{tpu_custom_call.1} parent=1 // loop_pre_header
      _
    $region3: #{tpu_custom_call.1} parent=1 // loop_header
      %s15 = sphi 0, %s19
      %p16 = scmp.ge.s32.totalorder %s15, 4
      %s25 = sphi 0, %s27
      %s28 = sphi 0, %s25
      %s29 = sphi 0, %s28
      %s45 = sphi 0, %s29
      %s49 = sphi 0, %s49
      %s51 = sphi 0, %s49
      %s52 = sphi 0, %s51
      %s66 = sphi 0, %s52
      %s70 = sphi 0, %s70
      %s72 = sphi 0, %s70
      %s73 = sphi 0, %s72
      %s87 = sphi 0, %s73
      %s91 = sphi 0, %s91
      %s93 = sphi 0, %s91
      %s94 = sphi 0, %s93
      %s108 = sphi 0, %s94
      %s112 = sphi 0, %s112
      %s114 = sphi 0, %s112
      %s115 = sphi 0, %s114
      %s129 = sphi 0, %s115
      %s135 = sphi 0, %s137
      %s138 = sphi 0, %s135
      %s139 = sphi 0, %s138
      %s155 = sphi 0, %s139
    $region4: #{tpu_custom_call.1} parent=1 // loop_header_branch
      %18 = sbr.rel (%p16) target = $region8
    $region5: #{tpu_custom_call.1} parent=1 // loop_body
      %s20 = ssub.s32 %s15, 1
      %s21 = ssub.s32 %s15, 2
      %s22 = sadd.s32 %s15, 1
      %s23 = ssub.s32 %s15, %s22
      %p24 = scmp.eq.s32.totalorder %s23, 0
      %s26 = sadd.s32 %s25, 1
      %s27 = scalar_select %p24, %s25, %s26
      %p30 = pneg %p24
      %p31 = scmp.eq.s32.totalorder %s15, 1
      %p32 = por %p30, %p31
      %p33 = scmp.ne.s32.totalorder %s25, %s28
      %p34 = scmp.eq.s32.totalorder %s15, 0
      %p35 = por %p33, %p34
      %p36 = scmp.ne.s32.totalorder %s25, %s28
      %p37 = scmp.eq.s32.totalorder %s20, 1
      %p38 = por %p36, %p37
      %p39 = scmp.ne.s32.totalorder %s28, %s29
      %p40 = scmp.eq.s32.totalorder %s20, 0
      %p41 = por %p39, %p40
      %p42 = scmp.ne.s32.totalorder %s28, %s29
      %p43 = scmp.eq.s32.totalorder %s21, 1
      %p44 = por %p42, %p43
      %p46 = scmp.ne.s32.totalorder %s29, %s45
      %p47 = scmp.eq.s32.totalorder %s21, 0
      %p48 = por %p46, %p47
      %s50 = sadd.s32 %s49, 1
      %p53 = scmp.eq.s32.totalorder %s15, 1
      %p54 = scmp.ne.s32.totalorder %s49, %s51
      %p55 = scmp.eq.s32.totalorder %s15, 0
      %p56 = por %p54, %p55
      %p57 = scmp.ne.s32.totalorder %s49, %s51
      %p58 = scmp.eq.s32.totalorder %s20, 1
      %p59 = por %p57, %p58
      %p60 = scmp.ne.s32.totalorder %s51, %s52
      %p61 = scmp.eq.s32.totalorder %s20, 0
      %p62 = por %p60, %p61
      %p63 = scmp.ne.s32.totalorder %s51, %s52
      %p64 = scmp.eq.s32.totalorder %s21, 1
      %p65 = por %p63, %p64
      %p67 = scmp.ne.s32.totalorder %s52, %s66
      %p68 = scmp.eq.s32.totalorder %s21, 0
      %p69 = por %p67, %p68
      %s71 = sadd.s32 %s70, 1
      %p74 = scmp.eq.s32.totalorder %s15, 1
      %p75 = scmp.ne.s32.totalorder %s70, %s72
      %p76 = scmp.eq.s32.totalorder %s15, 0
      %p77 = por %p75, %p76
      %p78 = scmp.ne.s32.totalorder %s70, %s72
      %p79 = scmp.eq.s32.totalorder %s20, 1
      %p80 = por %p78, %p79
      %p81 = scmp.ne.s32.totalorder %s72, %s73
      %p82 = scmp.eq.s32.totalorder %s20, 0
      %p83 = por %p81, %p82
      %p84 = scmp.ne.s32.totalorder %s72, %s73
      %p85 = scmp.eq.s32.totalorder %s21, 1
      %p86 = por %p84, %p85
      %p88 = scmp.ne.s32.totalorder %s73, %s87
      %p89 = scmp.eq.s32.totalorder %s21, 0
      %p90 = por %p88, %p89
      %s92 = sadd.s32 %s91, 1
      %p95 = scmp.eq.s32.totalorder %s15, 1
      %p96 = scmp.ne.s32.totalorder %s91, %s93
      %p97 = scmp.eq.s32.totalorder %s15, 0
      %p98 = por %p96, %p97
      %p99 = scmp.ne.s32.totalorder %s91, %s93
      %p100 = scmp.eq.s32.totalorder %s20, 1
      %p101 = por %p99, %p100
      %p102 = scmp.ne.s32.totalorder %s93, %s94
      %p103 = scmp.eq.s32.totalorder %s20, 0
      %p104 = por %p102, %p103
      %p105 = scmp.ne.s32.totalorder %s93, %s94
      %p106 = scmp.eq.s32.totalorder %s21, 1
      %p107 = por %p105, %p106
      %p109 = scmp.ne.s32.totalorder %s94, %s108
      %p110 = scmp.eq.s32.totalorder %s21, 0
      %p111 = por %p109, %p110
      %s113 = sadd.s32 %s112, 1
      %p116 = scmp.eq.s32.totalorder %s15, 1
      %p117 = scmp.ne.s32.totalorder %s112, %s114
      %p118 = scmp.eq.s32.totalorder %s15, 0
      %p119 = por %p117, %p118
      %p120 = scmp.ne.s32.totalorder %s112, %s114
      %p121 = scmp.eq.s32.totalorder %s20, 1
      %p122 = por %p120, %p121
      %p123 = scmp.ne.s32.totalorder %s114, %s115
      %p124 = scmp.eq.s32.totalorder %s20, 0
      %p125 = por %p123, %p124
      %p126 = scmp.ne.s32.totalorder %s114, %s115
      %p127 = scmp.eq.s32.totalorder %s21, 1
      %p128 = por %p126, %p127
      %p130 = scmp.ne.s32.totalorder %s115, %s129
      %p131 = scmp.eq.s32.totalorder %s21, 0
      %p132 = por %p130, %p131
      %s133 = ssub.s32 %s15, %s22
      %p134 = scmp.eq.s32.totalorder %s133, 0
      %s136 = sadd.s32 %s135, 1
      %s137 = scalar_select %p134, %s135, %s136
      %p140 = pneg %p134
      %p141 = scmp.eq.s32.totalorder %s15, 1
      %p142 = por %p140, %p141
      %p143 = scmp.ne.s32.totalorder %s135, %s138
      %p144 = scmp.eq.s32.totalorder %s15, 0
      %p145 = por %p143, %p144
      %p146 = scmp.ne.s32.totalorder %s135, %s138
      %p147 = scmp.eq.s32.totalorder %s20, 1
      %p148 = por %p146, %p147
      %p149 = scmp.ne.s32.totalorder %s138, %s139
      %p150 = scmp.eq.s32.totalorder %s20, 0
      %p151 = por %p149, %p150
      %p152 = scmp.ne.s32.totalorder %s138, %s139
      %p153 = scmp.eq.s32.totalorder %s21, 1
      %p154 = por %p152, %p153
      %p156 = scmp.ne.s32.totalorder %s139, %s155
      %p157 = scmp.eq.s32.totalorder %s21, 0
      %p158 = por %p156, %p157
      %p159 = scmp.le.s32.totalorder 1, %s15
      %p160 = scmp.lt.s32.totalorder %s15, 3
      %p161 = pnand %p159, %p160
      %p162 = pneg %p161
      // Predicated region
      $region9: #{tpu_custom_call.1} parent=5 // pred_check
        _
      $region10: #{tpu_custom_call.1} parent=5 // pred_check_branch
        %164 = sbr.rel (%p161) target = $region12
      $region11: #{tpu_custom_call.1} parent=5 // pred_region
        %s165 = ssub.s32 %s15, 1
        // Predicated region
        $region13: #{tpu_custom_call.1} parent=11 // pred_check
          %p166 = pneg %p62
        $region14: #{tpu_custom_call.1} parent=11 // pred_check_branch
          %168 = sbr.rel (%p166) target = $region16
        $region15: #{tpu_custom_call.1} parent=11 // pred_region
          _
        $region16: #{tpu_custom_call.1} parent=11 // pred_fallthru
          _
        // Predicated region
        $region17: #{tpu_custom_call.1} parent=11 // pred_check
          %p169 = pneg %p83
        $region18: #{tpu_custom_call.1} parent=11 // pred_check_branch
          %171 = sbr.rel (%p169) target = $region20
        $region19: #{tpu_custom_call.1} parent=11 // pred_region
          _
        $region20: #{tpu_custom_call.1} parent=11 // pred_fallthru
          _
        // Predicated region
        $region21: #{tpu_custom_call.1} parent=11 // pred_check
          %p172 = pneg %p104
        $region22: #{tpu_custom_call.1} parent=11 // pred_check_branch
          %174 = sbr.rel (%p172) target = $region24
        $region23: #{tpu_custom_call.1} parent=11 // pred_region
          _
        $region24: #{tpu_custom_call.1} parent=11 // pred_fallthru
          _
        // Predicated region
        $region25: #{tpu_custom_call.1} parent=11 // pred_check
          %p175 = pneg %p125
        $region26: #{tpu_custom_call.1} parent=11 // pred_check_branch
          %177 = sbr.rel (%p175) target = $region28
        $region27: #{tpu_custom_call.1} parent=11 // pred_region
          %s179 = ssub.s32 64, 64
          %180 = vsyncadd [#allocation3], %s179
          %s182 = sshll.u32 [#allocation2], 4
          %s183 = int_to_ptr.vmem [resolvable:$true] %s182
          %185 = dma.hbm_to_vmem [thread:$0]  %s4, 64, %s183, [#allocation3]
        $region28: #{tpu_custom_call.1} parent=11 // pred_fallthru
          _
      $region12: #{tpu_custom_call.1} parent=5 // pred_fallthru
        _
      %p186 = scmp.lt.s32.totalorder %s15, 2
      // Predicated region
      $region29: #{tpu_custom_call.1} parent=5 // pred_check
        %p187 = pneg %p186
      $region30: #{tpu_custom_call.1} parent=5 // pred_check_branch
        %189 = sbr.rel (%p187) target = $region32
      $region31: #{tpu_custom_call.1} parent=5 // pred_region
        // Predicated region
        $region33: #{tpu_custom_call.1} parent=31 // pred_check
          %p190 = pneg %p35
        $region34: #{tpu_custom_call.1} parent=31 // pred_check_branch
          %192 = sbr.rel (%p190) target = $region36
        $region35: #{tpu_custom_call.1} parent=31 // pred_region
          %p193 = scmp.lt.s32.totalorder %s15, 1
          %s194 = scalar_select %p193, %s15, 1
          %s195 = smul.addr %s194, 8
          %s196 = scalar_lea.vmem %s0, %s195
        $region36: #{tpu_custom_call.1} parent=31 // pred_fallthru
          _
      $region32: #{tpu_custom_call.1} parent=5 // pred_fallthru
        _
      %p197 = scmp.le.s32.totalorder 1, %s15
      %p198 = scmp.lt.s32.totalorder %s15, 3
      %p199 = pnand %p197, %p198
      %p200 = pneg %p199
      // Predicated region
      $region37: #{tpu_custom_call.1} parent=5 // pred_check
        _
      $region38: #{tpu_custom_call.1} parent=5 // pred_check_branch
        %202 = sbr.rel (%p199) target = $region40
      $region39: #{tpu_custom_call.1} parent=5 // pred_region
        %s203 = ssub.s32 %s15, 1
        // Predicated region
        $region41: #{tpu_custom_call.1} parent=39 // pred_check
          %p204 = pneg %p125
        $region42: #{tpu_custom_call.1} parent=39 // pred_check_branch
          %206 = sbr.rel (%p204) target = $region44
        $region43: #{tpu_custom_call.1} parent=39 // pred_region
          %207 = dma.done [#allocation3], 64
        $region44: #{tpu_custom_call.1} parent=39 // pred_fallthru
          _
        %p208 = scmp.lt.s32.totalorder %s20, 1
        %s209 = scalar_select %p208, %s20, 1
        %s210 = smul.addr %s209, 8
        %s211 = scalar_lea.vmem %s0, %s210
        %p212 = pneg %p41
        %p213 = pneg %p38
        %p214 = pneg %p62
        %p215 = pneg %p59
        %p216 = pneg %p83
        %p217 = pneg %p80
        %p218 = pneg %p104
        %p219 = pneg %p101
        %p220 = pneg %p125
        %p221 = pneg %p122
        %p222 = pneg %p151
        %p223 = pneg %p148
        %s224 = sand.u32 %s138, 1
        %s225 = scalar_lea.sflag [#allocation4], %s224
        %s226 = sand.u32 %s138, 1
        %s227 = smul.addr %s226, 8
        %s228 = scalar_lea.vmem [#allocation5], %s227
        %p229 = scmp.lt.s32.totalorder %s20, 1
        %s230 = scalar_select %p229, %s20, 1
        %s231 = smul.addr %s230, 8
        %s232 = scalar_lea.vmem %s0, %s231
        %v234 = vld [vmem:[%s232] sm:$0xff]
        %v235 = vld [vmem:[%s3] sm:$0x1]
        %v236 = vld [vmem:[%s3 + $0x1] sm:$0x1]
        %v237 = vld [vmem:[%s3 + $0x2] sm:$0x1]
        %v238 = vld [vmem:[#allocation2] sm:$0x1]
        %v239 = vld [vmem:[#allocation2 + $0x1] sm:$0x1]
        %v240 = vld [vmem:[#allocation2 + $0x2] sm:$0x1]
        %v241 = vpack.c.bf16 %v234, %v234
        %v242 = vld [vmem:[%s1] sm:$0xf]
        %v243 = vld [vmem:[%s1 + $0x4] sm:$0xf]
        %v244 = vld [vmem:[%s1 + $0x8] sm:$0xf]
        %v245 = vld [vmem:[%s1 + $0xc] sm:$0xf]
        %v246 = vlaneseq
        %v247 = vshrl.u32 %v246, 7
        %v248 = vsub.s32 0, %v247
        %v249 = vrot.slane %v235, %v248
        %v254 = vunpack.c.l.b16 %v242
        %v255 = vunpack.c.l.b16 %v243
        %v256 = vunpack.c.l.b16 %v244
        %v257 = vunpack.c.l.b16 %v245
        %v258 = vpack.c.b16 %v255, %v254
        %v259 = vpack.c.b16 %v257, %v256
        %vm262 = vcmask 261120
        %v264 = vsel %vm262, %v241, 0
        %266 = vmatprep.subr.bf16.mxu0 0
        %267 = vmatpush1.bf16.msra.mxu0 0
        %268 = vmatprep.subr.bf16.mxu0 0
        %269 = vmatpush1.bf16.msra.mxu0 0
        %270 = vmatprep.subr.bf16.mxu0 0
        %271 = vmatpush1.bf16.msra.mxu0 0
        %272 = vmatprep.subr.bf16.mxu0 0
        %273 = vmatpush1.bf16.msra.mxu0 0
        %274 = vmatprep.subr.bf16.mxu0 0
        %275 = vmatpush1.bf16.msra.mxu0 0
        %276 = vmatprep.subr.bf16.mxu0 0
        %277 = vmatpush1.bf16.msra.mxu0 0
        %278 = vmatprep.subr.bf16.mxu0 0
        %279 = vmatpush1.bf16.msra.mxu0 %v259
        %280 = vmatprep.subr.bf16.mxu0 0
        %281 = vmatpush1.bf16.msra.mxu0 %v258
        %282 = vmatprep.subr.bf16.mxu0 0
        %283 = vmatpush2.bf16.msra.mxu0 0
        %284 = vmatprep.subr.bf16.mxu0 0
        %285 = vmatpush2.bf16.msra.mxu0 0
        %286 = vmatprep.subr.bf16.mxu0 0
        %287 = vmatpush2.bf16.msra.mxu0 0
        %288 = vmatprep.subr.bf16.mxu0 0
        %289 = vmatpush2.bf16.msra.mxu0 0
        %290 = vmatprep.subr.bf16.mxu0 0
        %291 = vmatpush2.bf16.msra.mxu0 0
        %292 = vmatprep.subr.bf16.mxu0 0
        %293 = vmatpush2.bf16.msra.mxu0 0
        %294 = vmatprep.subr.bf16.mxu0 0
        %295 = vmatpush2.bf16.msra.mxu0 0
        %296 = vmatprep.subr.bf16.mxu0 0
        %297 = vmatpush2.bf16.msra.mxu0 0
        %298 = vmatprep.mubr.bf16.mxu0 0
        %299 = vmatmul.mubr.bf16.gmra.mxu0 %v264
        %v300 = vpop.f32.mrf.mxu0
        %v301 = vadd.f32 %v249, %v300
        %v302 = vpop.f32.mrf.mxu0
        %v303 = vpop.f32.mrf.mxu0
        %v304 = vpop.f32.mrf.mxu0
        %305 = vdwg.mxu0
        %vm306 = vcmask 64512
        %v307 = vsel %vm306, %v301, 0.0
        %308 = vadd.xlane.f32.xlu0 %v307
        %v309 = vpop.xlane.xlu0 %308
        %v310 = vrcp.pop 8.0
        %v311 = vmul.f32 %v309, %v310
        %v312 = vsub.f32 %v301, %v311
        %v313 = vmul.f32 %v312, %v312
        %v314 = vsel %vm306, %v313, 0.0
        %315 = vadd.xlane.f32.xlu0 %v314
        %v316 = vpop.xlane.xlu0 %315
        %v317 = vmul.f32 %v316, %v310
        %v318 = vadd.f32 %v317, 1e-05
        %v319 = vrsqrt.pop %v318
        %v320 = vmul.f32 %v312, %v319
        %v321 = vlaneseq
        %v322 = vshrl.u32 %v321, 7
        %v323 = vsub.s32 0, %v322
        %v324 = vrot.slane %v236, %v323
        %v325 = vmul.f32 %v320, %v324
        %v326 = vlaneseq
        %v327 = vshrl.u32 %v326, 7
        %v328 = vsub.s32 0, %v327
        %v329 = vrot.slane %v237, %v328
        %v330 = vadd.f32 %v325, %v329
        %v331 = vmul.f32 %v330, 0.5
        %v332 = vmul.f32 %v330, 0.70710677
        %v333 = verf.f32.pop %v332
        %v334 = vadd.f32 %v333, 1.0
        %v335 = vmul.f32 %v331, %v334
        %v336 = vpack.c.bf16 %v335, %v335
        %v337 = vld [vmem:[%s2] sm:$0xf]
        %v338 = vlaneseq
        %v339 = vshrl.u32 %v338, 7
        %v340 = vsub.s32 0, %v339
        %v341 = vrot.slane %v238, %v340
        %v343 = vsel %vm306, %v336, 0
        %vm345 = vcmask 1043456
        %v347 = vsel %vm345, %v337, 0
        %349 = vmatprep.subr.bf16.mxu0 0
        %350 = vmatpush1.bf16.msra.mxu0 0
        %351 = vmatprep.subr.bf16.mxu0 0
        %352 = vmatpush1.bf16.msra.mxu0 0
        %353 = vmatprep.subr.bf16.mxu0 0
        %354 = vmatpush1.bf16.msra.mxu0 0
        %355 = vmatprep.subr.bf16.mxu0 0
        %356 = vmatpush1.bf16.msra.mxu0 0
        %357 = vmatprep.subr.bf16.mxu0 0
        %358 = vmatpush1.bf16.msra.mxu0 0
        %359 = vmatprep.subr.bf16.mxu0 0
        %360 = vmatpush1.bf16.msra.mxu0 0
        %361 = vmatprep.subr.bf16.mxu0 0
        %362 = vmatpush1.bf16.msra.mxu0 0
        %363 = vmatprep.subr.bf16.mxu0 0
        %364 = vmatpush1.bf16.msra.mxu0 %v347
        %365 = vmatprep.subr.bf16.mxu0 0
        %366 = vmatpush2.bf16.msra.mxu0 0
        %367 = vmatprep.subr.bf16.mxu0 0
        %368 = vmatpush2.bf16.msra.mxu0 0
        %369 = vmatprep.subr.bf16.mxu0 0
        %370 = vmatpush2.bf16.msra.mxu0 0
        %371 = vmatprep.subr.bf16.mxu0 0
        %372 = vmatpush2.bf16.msra.mxu0 0
        %373 = vmatprep.subr.bf16.mxu0 0
        %374 = vmatpush2.bf16.msra.mxu0 0
        %375 = vmatprep.subr.bf16.mxu0 0
        %376 = vmatpush2.bf16.msra.mxu0 0
        %377 = vmatprep.subr.bf16.mxu0 0
        %378 = vmatpush2.bf16.msra.mxu0 0
        %379 = vmatprep.subr.bf16.mxu0 0
        %380 = vmatpush2.bf16.msra.mxu0 0
        %381 = vmatprep.mubr.bf16.mxu0 0
        %382 = vmatmul.mubr.bf16.gmra.mxu0 %v343
        %v383 = vpop.f32.mrf.mxu0
        %v384 = vadd.f32 %v341, %v383
        %v385 = vpop.f32.mrf.mxu0
        %v386 = vpop.f32.mrf.mxu0
        %v387 = vpop.f32.mrf.mxu0
        %388 = vdwg.mxu0
        %v389 = vsel %vm262, %v384, 0.0
        %390 = vadd.xlane.f32.xlu0 %v389
        %v391 = vpop.xlane.xlu0 %390
        %v392 = vrcp.pop 32.0
        %v393 = vmul.f32 %v391, %v392
        %v394 = vsub.f32 %v384, %v393
        %v395 = vmul.f32 %v394, %v394
        %v396 = vsel %vm262, %v395, 0.0
        %397 = vadd.xlane.f32.xlu0 %v396
        %v398 = vpop.xlane.xlu0 %397
        %v399 = vmul.f32 %v398, %v392
        %v400 = vadd.f32 %v399, 1e-05
        %v401 = vrsqrt.pop %v400
        %v402 = vmul.f32 %v394, %v401
        %v403 = vlaneseq
        %v404 = vshrl.u32 %v403, 7
        %v405 = vsub.s32 0, %v404
        %v406 = vrot.slane %v239, %v405
        %v407 = vmul.f32 %v402, %v406
        %v408 = vlaneseq
        %v409 = vshrl.u32 %v408, 7
        %v410 = vsub.s32 0, %v409
        %v411 = vrot.slane %v240, %v410
        %v412 = vadd.f32 %v407, %v411
        %v413 = vmul.f32 %v412, 0.1
        %v414 = vadd.f32 %v234, %v413
        %415 = vst.msk [vmem:[%s228] sm:$0xff] %vm262, %v414
        %s416 = sand.u32 %s138, 1
        %s417 = scalar_lea.sflag [#allocation4], %s416
        %s418 = sand.u32 %s138, 1
        %s419 = smul.addr %s418, 8
        %s420 = scalar_lea.vmem [#allocation5], %s419
        // Predicated region
        $region45: #{tpu_custom_call.1} parent=39 // pred_check
          %p421 = pneg %p148
        $region46: #{tpu_custom_call.1} parent=39 // pred_check_branch
          %423 = sbr.rel (%p421) target = $region48
        $region47: #{tpu_custom_call.1} parent=39 // pred_region
          %s425 = ssub.s32 128, 128
          %426 = vsyncadd %s417, %s425
          %s427 = smul.addr %s20, 128
          %s428 = scalar_lea.hbm %s5, %s427
          %s430 = sshll.u32 %s420, 4
          %s431 = int_to_ptr.vmem [resolvable:$true] %s430
          %433 = dma.vmem_to_hbm [thread:$0]  %s431, 128, %s428, %s417
        $region48: #{tpu_custom_call.1} parent=39 // pred_fallthru
          _
      $region40: #{tpu_custom_call.1} parent=5 // pred_fallthru
        _
      %p434 = scmp.le.s32.totalorder 2, %s15
      // Predicated region
      $region49: #{tpu_custom_call.1} parent=5 // pred_check
        %p435 = pneg %p434
      $region50: #{tpu_custom_call.1} parent=5 // pred_check_branch
        %437 = sbr.rel (%p435) target = $region52
      $region51: #{tpu_custom_call.1} parent=5 // pred_region
        %s438 = ssub.s32 %s15, 2
        // Predicated region
        $region53: #{tpu_custom_call.1} parent=51 // pred_check
          %p439 = pneg %p154
        $region54: #{tpu_custom_call.1} parent=51 // pred_check_branch
          %441 = sbr.rel (%p439) target = $region56
        $region55: #{tpu_custom_call.1} parent=51 // pred_region
          %s442 = sand.u32 %s139, 1
          %s443 = scalar_lea.sflag [#allocation4], %s442
          %s444 = sand.u32 %s139, 1
          %s445 = smul.addr %s444, 8
          %s446 = scalar_lea.vmem [#allocation5], %s445
          %447 = dma.done %s443, 128
        $region56: #{tpu_custom_call.1} parent=51 // pred_fallthru
          _
      $region52: #{tpu_custom_call.1} parent=5 // pred_fallthru
        _
    $region6: #{tpu_custom_call.1} parent=1 // loop_footer
      %s19 = sadd.s32 1, %s15
    $region7: #{tpu_custom_call.1} parent=1 // loop_footer_branch
      %14 = sbr.rel target = $region3
    $region8: #{tpu_custom_call.1} parent=1 // loop_exit
      _
    %448 = vsyncpa [#allocation3], 1
    %s449 = scalar_lea.sflag [#allocation3], 1
    %450 = vsyncpa %s449, 1
    %451 = vsyncpa [#allocation4], 1
    %s452 = scalar_lea.sflag [#allocation4], 1
    %453 = vsyncpa %s452, 1

// kernel: tpu_custom_call.1
$region0: #{tpu_custom_call.1}
  #allocation0 [shape = 'u32[]', space=smem, size = 0x4, offset = 0x4, fixed_abs, tag = 'smem constant byte address 0x4 - core index']
  #allocation1 [shape = 'u32[144,128]{1,0:T(1,128)}', space=vmem, size = 0x12000, scoped, tag = 'internal scratch']
  %s0 = inlined_call_operand.vmem [shape: f32[16,32], index: 0, kind: input, shape index: {}]
  %s1 = inlined_call_operand.vmem [shape: bf16[32,8], index: 1, kind: input, shape index: {}]
  %s2 = inlined_call_operand.vmem [shape: bf16[8,32], index: 2, kind: input, shape index: {}]
  %s3 = inlined_call_operand.vmem [shape: f32[3,8], index: 3, kind: input, shape index: {}]
  %s4 = inlined_call_operand.hbm [shape: f32[3,32], index: 4, kind: input, shape index: {}]
  %s5 = inlined_call_operand.hbm [shape: f32[16,32], index: 5, kind: output, shape index: {}]
  %s6 = sld [smem:[#allocation0]]
  $region57: #{tpu_custom_call.1} parent=0
    _
  %s8 = ssub.s32 1, %s6
  %s9 = scalar_select 0, %s8, %s6
  $region1: #{tpu_custom_call.1} parent=0
    #allocation2 [shape = 'u8[2048]{0}', space=vmem, size = 0x800, scoped, tag = 'input window, operand 4, single buffered']
    #allocation3 [shape = 's32[2]{0}', space=sflag, size = 0x8, scoped, tag = 'scoped memory for tpu_custom_call.1']
    #allocation4 [shape = 's32[2]{0}', space=sflag, size = 0x8, scoped, tag = 'scoped memory for tpu_custom_call.1']
    #allocation5 [shape = 'u8[8192]{0}', space=vmem, size = 0x2000, scoped, tag = 'output window, operand 0']
    %10 = vsyncpa [#allocation3], 0
    %11 = vsyncpa [#allocation4], 0
    %s12 = scalar_lea.sflag [#allocation4], 1
    %13 = vsyncpa %s12, 0
    loop: start=0, step=1, limit=4
    $region2: #{tpu_custom_call.1} parent=1 // loop_pre_header
      _
    $region3: #{tpu_custom_call.1} parent=1 // loop_header
      %s15 = sphi 0, %s19
      %p16 = scmp.ge.s32.totalorder %s15, 4
      %s25 = sphi 0, %s27
      %s28 = sphi 0, %s25
      %s29 = sphi 0, %s28
      %s45 = sphi 0, %s29
      %s49 = sphi 0, %s49
      %s51 = sphi 0, %s49
      %s52 = sphi 0, %s51
      %s66 = sphi 0, %s52
      %s70 = sphi 0, %s70
      %s72 = sphi 0, %s70
      %s73 = sphi 0, %s72
      %s87 = sphi 0, %s73
      %s91 = sphi 0, %s91
      %s93 = sphi 0, %s91
      %s94 = sphi 0, %s93
      %s108 = sphi 0, %s94
      %s112 = sphi 0, %s112
      %s114 = sphi 0, %s112
      %s115 = sphi 0, %s114
      %s129 = sphi 0, %s115
      %s135 = sphi 0, %s137
      %s138 = sphi 0, %s135
      %s139 = sphi 0, %s138
      %s155 = sphi 0, %s139
    $region4: #{tpu_custom_call.1} parent=1 // loop_header_branch
      %18 = sbr.rel (%p16) target = $region8
    $region5: #{tpu_custom_call.1} parent=1 // loop_body
      %s20 = ssub.s32 %s15, 1
      %s21 = ssub.s32 %s15, 2
      %s22 = sadd.s32 %s15, 1
      %s23 = ssub.s32 %s15, %s22
      %p24 = scmp.eq.s32.totalorder %s23, 0
      %s26 = sadd.s32 %s25, 1
      %s27 = scalar_select %p24, %s25, %s26
      %p30 = pneg %p24
      %p31 = scmp.eq.s32.totalorder %s15, 1
      %p32 = por %p30, %p31
      %p33 = scmp.ne.s32.totalorder %s25, %s28
      %p34 = scmp.eq.s32.totalorder %s15, 0
      %p35 = por %p33, %p34
      %p36 = scmp.ne.s32.totalorder %s25, %s28
      %p37 = scmp.eq.s32.totalorder %s20, 1
      %p38 = por %p36, %p37
      %p39 = scmp.ne.s32.totalorder %s28, %s29
      %p40 = scmp.eq.s32.totalorder %s20, 0
      %p41 = por %p39, %p40
      %p42 = scmp.ne.s32.totalorder %s28, %s29
      %p43 = scmp.eq.s32.totalorder %s21, 1
      %p44 = por %p42, %p43
      %p46 = scmp.ne.s32.totalorder %s29, %s45
      %p47 = scmp.eq.s32.totalorder %s21, 0
      %p48 = por %p46, %p47
      %s50 = sadd.s32 %s49, 1
      %p53 = scmp.eq.s32.totalorder %s15, 1
      %p54 = scmp.ne.s32.totalorder %s49, %s51
      %p55 = scmp.eq.s32.totalorder %s15, 0
      %p56 = por %p54, %p55
      %p57 = scmp.ne.s32.totalorder %s49, %s51
      %p58 = scmp.eq.s32.totalorder %s20, 1
      %p59 = por %p57, %p58
      %p60 = scmp.ne.s32.totalorder %s51, %s52
      %p61 = scmp.eq.s32.totalorder %s20, 0
      %p62 = por %p60, %p61
      %p63 = scmp.ne.s32.totalorder %s51, %s52
      %p64 = scmp.eq.s32.totalorder %s21, 1
      %p65 = por %p63, %p64
      %p67 = scmp.ne.s32.totalorder %s52, %s66
      %p68 = scmp.eq.s32.totalorder %s21, 0
      %p69 = por %p67, %p68
      %s71 = sadd.s32 %s70, 1
      %p74 = scmp.eq.s32.totalorder %s15, 1
      %p75 = scmp.ne.s32.totalorder %s70, %s72
      %p76 = scmp.eq.s32.totalorder %s15, 0
      %p77 = por %p75, %p76
      %p78 = scmp.ne.s32.totalorder %s70, %s72
      %p79 = scmp.eq.s32.totalorder %s20, 1
      %p80 = por %p78, %p79
      %p81 = scmp.ne.s32.totalorder %s72, %s73
      %p82 = scmp.eq.s32.totalorder %s20, 0
      %p83 = por %p81, %p82
      %p84 = scmp.ne.s32.totalorder %s72, %s73
      %p85 = scmp.eq.s32.totalorder %s21, 1
      %p86 = por %p84, %p85
      %p88 = scmp.ne.s32.totalorder %s73, %s87
      %p89 = scmp.eq.s32.totalorder %s21, 0
      %p90 = por %p88, %p89
      %s92 = sadd.s32 %s91, 1
      %p95 = scmp.eq.s32.totalorder %s15, 1
      %p96 = scmp.ne.s32.totalorder %s91, %s93
      %p97 = scmp.eq.s32.totalorder %s15, 0
      %p98 = por %p96, %p97
      %p99 = scmp.ne.s32.totalorder %s91, %s93
      %p100 = scmp.eq.s32.totalorder %s20, 1
      %p101 = por %p99, %p100
      %p102 = scmp.ne.s32.totalorder %s93, %s94
      %p103 = scmp.eq.s32.totalorder %s20, 0
      %p104 = por %p102, %p103
      %p105 = scmp.ne.s32.totalorder %s93, %s94
      %p106 = scmp.eq.s32.totalorder %s21, 1
      %p107 = por %p105, %p106
      %p109 = scmp.ne.s32.totalorder %s94, %s108
      %p110 = scmp.eq.s32.totalorder %s21, 0
      %p111 = por %p109, %p110
      %s113 = sadd.s32 %s112, 1
      %p116 = scmp.eq.s32.totalorder %s15, 1
      %p117 = scmp.ne.s32.totalorder %s112, %s114
      %p118 = scmp.eq.s32.totalorder %s15, 0
      %p119 = por %p117, %p118
      %p120 = scmp.ne.s32.totalorder %s112, %s114
      %p121 = scmp.eq.s32.totalorder %s20, 1
      %p122 = por %p120, %p121
      %p123 = scmp.ne.s32.totalorder %s114, %s115
      %p124 = scmp.eq.s32.totalorder %s20, 0
      %p125 = por %p123, %p124
      %p126 = scmp.ne.s32.totalorder %s114, %s115
      %p127 = scmp.eq.s32.totalorder %s21, 1
      %p128 = por %p126, %p127
      %p130 = scmp.ne.s32.totalorder %s115, %s129
      %p131 = scmp.eq.s32.totalorder %s21, 0
      %p132 = por %p130, %p131
      %s133 = ssub.s32 %s15, %s22
      %p134 = scmp.eq.s32.totalorder %s133, 0
      %s136 = sadd.s32 %s135, 1
      %s137 = scalar_select %p134, %s135, %s136
      %p140 = pneg %p134
      %p141 = scmp.eq.s32.totalorder %s15, 1
      %p142 = por %p140, %p141
      %p143 = scmp.ne.s32.totalorder %s135, %s138
      %p144 = scmp.eq.s32.totalorder %s15, 0
      %p145 = por %p143, %p144
      %p146 = scmp.ne.s32.totalorder %s135, %s138
      %p147 = scmp.eq.s32.totalorder %s20, 1
      %p148 = por %p146, %p147
      %p149 = scmp.ne.s32.totalorder %s138, %s139
      %p150 = scmp.eq.s32.totalorder %s20, 0
      %p151 = por %p149, %p150
      %p152 = scmp.ne.s32.totalorder %s138, %s139
      %p153 = scmp.eq.s32.totalorder %s21, 1
      %p154 = por %p152, %p153
      %p156 = scmp.ne.s32.totalorder %s139, %s155
      %p157 = scmp.eq.s32.totalorder %s21, 0
      %p158 = por %p156, %p157
      %p159 = scmp.le.s32.totalorder 1, %s15
      %p160 = scmp.lt.s32.totalorder %s15, 3
      %p161 = pnand %p159, %p160
      %p162 = pneg %p161
      // Predicated region
      $region9: #{tpu_custom_call.1} parent=5 // pred_check
        _
      $region10: #{tpu_custom_call.1} parent=5 // pred_check_branch
        %164 = sbr.rel (%p161) target = $region12
      $region11: #{tpu_custom_call.1} parent=5 // pred_region
        %s165 = ssub.s32 %s15, 1
        // Predicated region
        $region13: #{tpu_custom_call.1} parent=11 // pred_check
          %p166 = pneg %p62
        $region14: #{tpu_custom_call.1} parent=11 // pred_check_branch
          %168 = sbr.rel (%p166) target = $region16
        $region15: #{tpu_custom_call.1} parent=11 // pred_region
          _
        $region16: #{tpu_custom_call.1} parent=11 // pred_fallthru
          _
        // Predicated region
        $region17: #{tpu_custom_call.1} parent=11 // pred_check
          %p169 = pneg %p83
        $region18: #{tpu_custom_call.1} parent=11 // pred_check_branch
          %171 = sbr.rel (%p169) target = $region20
        $region19: #{tpu_custom_call.1} parent=11 // pred_region
          _
        $region20: #{tpu_custom_call.1} parent=11 // pred_fallthru
          _
        // Predicated region
        $region21: #{tpu_custom_call.1} parent=11 // pred_check
          %p172 = pneg %p104
        $region22: #{tpu_custom_call.1} parent=11 // pred_check_branch
          %174 = sbr.rel (%p172) target = $region24
        $region23: #{tpu_custom_call.1} parent=11 // pred_region
          _
        $region24: #{tpu_custom_call.1} parent=11 // pred_fallthru
          _
        // Predicated region
        $region25: #{tpu_custom_call.1} parent=11 // pred_check
          %p175 = pneg %p125
        $region26: #{tpu_custom_call.1} parent=11 // pred_check_branch
          %177 = sbr.rel (%p175) target = $region28
        $region27: #{tpu_custom_call.1} parent=11 // pred_region
          %s179 = ssub.s32 64, 64
          %180 = vsyncadd [#allocation3], %s179
          %s182 = sshll.u32 [#allocation2], 4
          %s183 = int_to_ptr.vmem [resolvable:$true] %s182
          %185 = dma.hbm_to_vmem [thread:$0]  %s4, 64, %s183, [#allocation3]
        $region28: #{tpu_custom_call.1} parent=11 // pred_fallthru
          _
      $region12: #{tpu_custom_call.1} parent=5 // pred_fallthru
        _
      %p186 = scmp.lt.s32.totalorder %s15, 2
      // Predicated region
      $region29: #{tpu_custom_call.1} parent=5 // pred_check
        %p187 = pneg %p186
      $region30: #{tpu_custom_call.1} parent=5 // pred_check_branch
        %189 = sbr.rel (%p187) target = $region32
      $region31: #{tpu_custom_call.1} parent=5 // pred_region
        // Predicated region
        $region33: #{tpu_custom_call.1} parent=31 // pred_check
          %p190 = pneg %p35
        $region34: #{tpu_custom_call.1} parent=31 // pred_check_branch
          %192 = sbr.rel (%p190) target = $region36
        $region35: #{tpu_custom_call.1} parent=31 // pred_region
          %p193 = scmp.lt.s32.totalorder %s15, 1
          %s194 = scalar_select %p193, %s15, 1
          %s195 = smul.addr %s194, 8
          %s196 = scalar_lea.vmem %s0, %s195
        $region36: #{tpu_custom_call.1} parent=31 // pred_fallthru
          _
      $region32: #{tpu_custom_call.1} parent=5 // pred_fallthru
        _
      %p197 = scmp.le.s32.totalorder 1, %s15
      %p198 = scmp.lt.s32.totalorder %s15, 3
      %p199 = pnand %p197, %p198
      %p200 = pneg %p199
      // Predicated region
      $region37: #{tpu_custom_call.1} parent=5 // pred_check
        _
      $region38: #{tpu_custom_call.1} parent=5 // pred_check_branch
        %202 = sbr.rel (%p199) target = $region40
      $region39: #{tpu_custom_call.1} parent=5 // pred_region
        %s203 = ssub.s32 %s15, 1
        // Predicated region
        $region41: #{tpu_custom_call.1} parent=39 // pred_check
          %p204 = pneg %p125
        $region42: #{tpu_custom_call.1} parent=39 // pred_check_branch
          %206 = sbr.rel (%p204) target = $region44
        $region43: #{tpu_custom_call.1} parent=39 // pred_region
          %207 = dma.done [#allocation3], 64
        $region44: #{tpu_custom_call.1} parent=39 // pred_fallthru
          _
        %p208 = scmp.lt.s32.totalorder %s20, 1
        %s209 = scalar_select %p208, %s20, 1
        %s210 = smul.addr %s209, 8
        %s211 = scalar_lea.vmem %s0, %s210
        %p212 = pneg %p41
        %p213 = pneg %p38
        %p214 = pneg %p62
        %p215 = pneg %p59
        %p216 = pneg %p83
        %p217 = pneg %p80
        %p218 = pneg %p104
        %p219 = pneg %p101
        %p220 = pneg %p125
        %p221 = pneg %p122
        %p222 = pneg %p151
        %p223 = pneg %p148
        %s224 = sand.u32 %s138, 1
        %s225 = scalar_lea.sflag [#allocation4], %s224
        %s226 = sand.u32 %s138, 1
        %s227 = smul.addr %s226, 8
        %s228 = scalar_lea.vmem [#allocation5], %s227
        %p229 = scmp.lt.s32.totalorder %s20, 1
        %s230 = scalar_select %p229, %s20, 1
        %s231 = smul.addr %s230, 8
        %s232 = scalar_lea.vmem %s0, %s231
        %v234 = vld [vmem:[%s232] sm:$0xff]
        %v235 = vld [vmem:[%s3] sm:$0x1]
        %v236 = vld [vmem:[%s3 + $0x1] sm:$0x1]
        %v237 = vld [vmem:[%s3 + $0x2] sm:$0x1]
        %v238 = vld [vmem:[#allocation2] sm:$0x1]
        %v239 = vld [vmem:[#allocation2 + $0x1] sm:$0x1]
        %v240 = vld [vmem:[#allocation2 + $0x2] sm:$0x1]
        %v241 = vpack.c.bf16 %v234, %v234
        %v242 = vld [vmem:[%s1] sm:$0xf]
        %v243 = vld [vmem:[%s1 + $0x4] sm:$0xf]
        %v244 = vld [vmem:[%s1 + $0x8] sm:$0xf]
        %v245 = vld [vmem:[%s1 + $0xc] sm:$0xf]
        %v246 = vlaneseq
        %v247 = vshrl.u32 %v246, 7
        %v248 = vsub.s32 0, %v247
        %v249 = vrot.slane %v235, %v248
        %v254 = vunpack.c.l.b16 %v242
        %v255 = vunpack.c.l.b16 %v243
        %v256 = vunpack.c.l.b16 %v244
        %v257 = vunpack.c.l.b16 %v245
        %v258 = vpack.c.b16 %v255, %v254
        %v259 = vpack.c.b16 %v257, %v256
        %vm262 = vcmask 261120
        %v264 = vsel %vm262, %v241, 0
        %266 = vmatprep.subr.bf16.mxu0 0
        %267 = vmatpush1.bf16.msra.mxu0 0
        %268 = vmatprep.subr.bf16.mxu0 0
        %269 = vmatpush1.bf16.msra.mxu0 0
        %270 = vmatprep.subr.bf16.mxu0 0
        %271 = vmatpush1.bf16.msra.mxu0 0
        %272 = vmatprep.subr.bf16.mxu0 0
        %273 = vmatpush1.bf16.msra.mxu0 0
        %274 = vmatprep.subr.bf16.mxu0 0
        %275 = vmatpush1.bf16.msra.mxu0 0
        %276 = vmatprep.subr.bf16.mxu0 0
        %277 = vmatpush1.bf16.msra.mxu0 0
        %278 = vmatprep.subr.bf16.mxu0 0
        %279 = vmatpush1.bf16.msra.mxu0 %v259
        %280 = vmatprep.subr.bf16.mxu0 0
        %281 = vmatpush1.bf16.msra.mxu0 %v258
        %282 = vmatprep.subr.bf16.mxu0 0
        %283 = vmatpush2.bf16.msra.mxu0 0
        %284 = vmatprep.subr.bf16.mxu0 0
        %285 = vmatpush2.bf16.msra.mxu0 0
        %286 = vmatprep.subr.bf16.mxu0 0
        %287 = vmatpush2.bf16.msra.mxu0 0
        %288 = vmatprep.subr.bf16.mxu0 0
        %289 = vmatpush2.bf16.msra.mxu0 0
        %290 = vmatprep.subr.bf16.mxu0 0
        %291 = vmatpush2.bf16.msra.mxu0 0
        %292 = vmatprep.subr.bf16.mxu0 0
        %293 = vmatpush2.bf16.msra.mxu0 0
        %294 = vmatprep.subr.bf16.mxu0 0
        %295 = vmatpush2.bf16.msra.mxu0 0
        %296 = vmatprep.subr.bf16.mxu0 0
        %297 = vmatpush2.bf16.msra.mxu0 0
        %298 = vmatprep.mubr.bf16.mxu0 0
        %299 = vmatmul.mubr.bf16.gmra.mxu0 %v264
        %v300 = vpop.f32.mrf.mxu0
        %v301 = vadd.f32 %v249, %v300
        %v302 = vpop.f32.mrf.mxu0
        %v303 = vpop.f32.mrf.mxu0
        %v304 = vpop.f32.mrf.mxu0
        %305 = vdwg.mxu0
        %vm306 = vcmask 64512
        %v307 = vsel %vm306, %v301, 0.0
        %308 = vadd.xlane.f32.xlu0 %v307
        %v309 = vpop.xlane.xlu0 %308
        %v310 = vrcp.pop 8.0
        %v311 = vmul.f32 %v309, %v310
        %v312 = vsub.f32 %v301, %v311
        %v313 = vmul.f32 %v312, %v312
        %v314 = vsel %vm306, %v313, 0.0
        %315 = vadd.xlane.f32.xlu0 %v314
        %v316 = vpop.xlane.xlu0 %315
        %v317 = vmul.f32 %v316, %v310
        %v318 = vadd.f32 %v317, 1e-05
        %v319 = vrsqrt.pop %v318
        %v320 = vmul.f32 %v312, %v319
        %v321 = vlaneseq
        %v322 = vshrl.u32 %v321, 7
        %v323 = vsub.s32 0, %v322
        %v324 = vrot.slane %v236, %v323
        %v325 = vmul.f32 %v320, %v324
        %v326 = vlaneseq
        %v327 = vshrl.u32 %v326, 7
        %v328 = vsub.s32 0, %v327
        %v329 = vrot.slane %v237, %v328
        %v330 = vadd.f32 %v325, %v329
        %v331 = vmul.f32 %v330, 0.5
        %v332 = vmul.f32 %v330, 0.70710677
        %v333 = verf.f32.pop %v332
        %v334 = vadd.f32 %v333, 1.0
        %v335 = vmul.f32 %v331, %v334
        %v336 = vpack.c.bf16 %v335, %v335
        %v337 = vld [vmem:[%s2] sm:$0xf]
        %v338 = vlaneseq
        %v339 = vshrl.u32 %v338, 7
        %v340 = vsub.s32 0, %v339
        %v341 = vrot.slane %v238, %v340
        %v343 = vsel %vm306, %v336, 0
        %vm345 = vcmask 1043456
        %v347 = vsel %vm345, %v337, 0
        %349 = vmatprep.subr.bf16.mxu0 0
        %350 = vmatpush1.bf16.msra.mxu0 0
        %351 = vmatprep.subr.bf16.mxu0 0
        %352 = vmatpush1.bf16.msra.mxu0 0
        %353 = vmatprep.subr.bf16.mxu0 0
        %354 = vmatpush1.bf16.msra.mxu0 0
        %355 = vmatprep.subr.bf16.mxu0 0
        %356 = vmatpush1.bf16.msra.mxu0 0
        %357 = vmatprep.subr.bf16.mxu0 0
        %358 = vmatpush1.bf16.msra.mxu0 0
        %359 = vmatprep.subr.bf16.mxu0 0
        %360 = vmatpush1.bf16.msra.mxu0 0
        %361 = vmatprep.subr.bf16.mxu0 0
        %362 = vmatpush1.bf16.msra.mxu0 0
        %363 = vmatprep.subr.bf16.mxu0 0
        %364 = vmatpush1.bf16.msra.mxu0 %v347
        %365 = vmatprep.subr.bf16.mxu0 0
        %366 = vmatpush2.bf16.msra.mxu0 0
        %367 = vmatprep.subr.bf16.mxu0 0
        %368 = vmatpush2.bf16.msra.mxu0 0
        %369 = vmatprep.subr.bf16.mxu0 0
        %370 = vmatpush2.bf16.msra.mxu0 0
        %371 = vmatprep.subr.bf16.mxu0 0
        %372 = vmatpush2.bf16.msra.mxu0 0
        %373 = vmatprep.subr.bf16.mxu0 0
        %374 = vmatpush2.bf16.msra.mxu0 0
        %375 = vmatprep.subr.bf16.mxu0 0
        %376 = vmatpush2.bf16.msra.mxu0 0
        %377 = vmatprep.subr.bf16.mxu0 0
        %378 = vmatpush2.bf16.msra.mxu0 0
        %379 = vmatprep.subr.bf16.mxu0 0
        %380 = vmatpush2.bf16.msra.mxu0 0
        %381 = vmatprep.mubr.bf16.mxu0 0
        %382 = vmatmul.mubr.bf16.gmra.mxu0 %v343
        %v383 = vpop.f32.mrf.mxu0
        %v384 = vadd.f32 %v341, %v383
        %v385 = vpop.f32.mrf.mxu0
        %v386 = vpop.f32.mrf.mxu0
        %v387 = vpop.f32.mrf.mxu0
        %388 = vdwg.mxu0
        %v389 = vsel %vm262, %v384, 0.0
        %390 = vadd.xlane.f32.xlu0 %v389
        %v391 = vpop.xlane.xlu0 %390
        %v392 = vrcp.pop 32.0
        %v393 = vmul.f32 %v391, %v392
        %v394 = vsub.f32 %v384, %v393
        %v395 = vmul.f32 %v394, %v394
        %v396 = vsel %vm262, %v395, 0.0
        %397 = vadd.xlane.f32.xlu0 %v396
        %v398 = vpop.xlane.xlu0 %397
        %v399 = vmul.f32 %v398, %v392
        %v400 = vadd.f32 %v399, 1e-05
        %v401 = vrsqrt.pop %v400
        %v402 = vmul.f32 %v394, %v401
        %v403 = vlaneseq
        %v404 = vshrl.u32 %v403, 7
        %v405 = vsub.s32 0, %v404
        %v406 = vrot.slane %v239, %v405
        %v407 = vmul.f32 %v402, %v406
        %v408 = vlaneseq
        %v409 = vshrl.u32 %v408, 7
        %v410 = vsub.s32 0, %v409
        %v411 = vrot.slane %v240, %v410
        %v412 = vadd.f32 %v407, %v411
        %v413 = vmul.f32 %v412, 0.1
        %v414 = vadd.f32 %v234, %v413
        %415 = vst.msk [vmem:[%s228] sm:$0xff] %vm262, %v414
        %s416 = sand.u32 %s138, 1
        %s417 = scalar_lea.sflag [#allocation4], %s416
        %s418 = sand.u32 %s138, 1
        %s419 = smul.addr %s418, 8
        %s420 = scalar_lea.vmem [#allocation5], %s419
        // Predicated region
        $region45: #{tpu_custom_call.1} parent=39 // pred_check
          %p421 = pneg %p148
        $region46: #{tpu_custom_call.1} parent=39 // pred_check_branch
          %423 = sbr.rel (%p421) target = $region48
        $region47: #{tpu_custom_call.1} parent=39 // pred_region
          %s425 = ssub.s32 128, 128
          %426 = vsyncadd %s417, %s425
          %s427 = smul.addr %s20, 128
          %s428 = scalar_lea.hbm %s5, %s427
          %s430 = sshll.u32 %s420, 4
          %s431 = int_to_ptr.vmem [resolvable:$true] %s430
          %433 = dma.vmem_to_hbm [thread:$0]  %s431, 128, %s428, %s417
        $region48: #{tpu_custom_call.1} parent=39 // pred_fallthru
          _
      $region40: #{tpu_custom_call.1} parent=5 // pred_fallthru
        _
      %p434 = scmp.le.s32.totalorder 2, %s15
      // Predicated region
      $region49: #{tpu_custom_call.1} parent=5 // pred_check
        %p435 = pneg %p434
      $region50: #{tpu_custom_call.1} parent=5 // pred_check_branch
        %437 = sbr.rel (%p435) target = $region52
      $region51: #{tpu_custom_call.1} parent=5 // pred_region
        %s438 = ssub.s32 %s15, 2
        // Predicated region
        $region53: #{tpu_custom_call.1} parent=51 // pred_check
          %p439 = pneg %p154
        $region54: #{tpu_custom_call.1} parent=51 // pred_check_branch
          %441 = sbr.rel (%p439) target = $region56
        $region55: #{tpu_custom_call.1} parent=51 // pred_region
          %s442 = sand.u32 %s139, 1
          %s443 = scalar_lea.sflag [#allocation4], %s442
          %s444 = sand.u32 %s139, 1
          %s445 = smul.addr %s444, 8
          %s446 = scalar_lea.vmem [#allocation5], %s445
          %447 = dma.done %s443, 128
        $region56: #{tpu_custom_call.1} parent=51 // pred_fallthru
          _
      $region52: #{tpu_custom_call.1} parent=5 // pred_fallthru
        _
    $region6: #{tpu_custom_call.1} parent=1 // loop_footer
      %s19 = sadd.s32 1, %s15
    $region7: #{tpu_custom_call.1} parent=1 // loop_footer_branch
      %14 = sbr.rel target = $region3
    $region8: #{tpu_custom_call.1} parent=1 // loop_exit
      _
    %448 = vsyncpa [#allocation3], 1
    %s449 = scalar_lea.sflag [#allocation3], 1
    %450 = vsyncpa %s449, 1
    %451 = vsyncpa [#allocation4], 1
    %s452 = scalar_lea.sflag [#allocation4], 1
    %453 = vsyncpa %s452, 1

</llo_original>
